<compile_context>
chip_gen: v5e
topology: v5e:2x2
jax: 0.10.0
libtpu: 0.0.40
codegen_flags: <defaults>
</compile_context>

<pallas_src>
import jax
import jax.numpy as jnp
from jax.experimental import pallas as pl
from jax.experimental.pallas import tpu as pltpu


_TARGET_BLOCK_BYTES = 4 * 1024 * 1024  # per input buffer (2x fits v7x 64 MiB VMEM)


# ---------------------------------------------------------------------------
# Kernels
# ---------------------------------------------------------------------------

def _flat_kernel(x_ref, wmat_ref, b_ref, o_ref):
    """Lane-dense path for W < 128.

    x_ref:    (bn, K*W) lane-dense block of flattened inputs
    wmat_ref: (K*W, W)  structured weight, Wmat[k*W + j, j] = w[k]  (resident)
    b_ref:    (1, 1)    bias scalar in SMEM
    o_ref:    (bn, W)
    """
    acc = jnp.dot(x_ref[...], wmat_ref[...], preferred_element_type=jnp.float32)
    o_ref[...] = jax.nn.sigmoid(acc + b_ref[0, 0]).astype(o_ref.dtype)


def _wide_kernel(x_ref, w_ref, b_ref, o_ref):
    """Lane-dense path for W % 128 == 0.

    x_ref: (bn, K, tw); w_ref: (K, 1) resident; b_ref: (1, 1) SMEM; o_ref: (bn, tw)
    """
    # VPU broadcast-multiply + sublane-axis reduce; MXU not needed (memory-bound op).
    acc = jnp.sum(x_ref[...] * w_ref[...], axis=1)
    o_ref[...] = jax.nn.sigmoid(acc + b_ref[0, 0]).astype(o_ref.dtype)


# ---------------------------------------------------------------------------
# Block sizing helpers
# ---------------------------------------------------------------------------

def _pick_batch_block(n, row_bytes, target_bytes):
    """Rows per grid step: large blocks, sublane-friendly shapes."""
    bn = max(1, min(n, target_bytes // max(row_bytes, 1)))
    if bn >= n:
        # Whole batch fits in one block.  Split across >=2 grid steps (for v7x's two
        # TensorCores) only when each half is still a well-shaped block.
        if n >= 16:
            half = (n + 1) // 2
            bn = min(n, ((half + 7) // 8) * 8)
        else:
            bn = n
    elif bn >= 8:
        bn = (bn // 8) * 8  # keep the sublane (second-minor) block dim 8-aligned
    return bn


def _pick_w_tile(w):
    for tw in (512, 256, 128):
        if w % tw == 0:
            return tw
    return w  # unreachable when w % 128 == 0


# ---------------------------------------------------------------------------
# Forward wrappers
# ---------------------------------------------------------------------------

def _forward_flat(x_flat, w_vec, b_r, w_out, target_bytes):
    n, kw = x_flat.shape
    itemsize = x_flat.dtype.itemsize
    # Structured weight so that (x_flat @ wmat)[n, j] == sum_k x[n, k, j] * w[k].
    wmat = (w_vec[:, None, None]
            * jnp.eye(w_out, dtype=x_flat.dtype)).reshape(kw, w_out)

    bn = _pick_batch_block(n, kw * itemsize, target_bytes)
    grid = (pl.cdiv(n, bn),)

    return pl.pallas_call(
        _flat_kernel,
        out_shape=jax.ShapeDtypeStruct((n, w_out), x_flat.dtype),
        grid_spec=pltpu.PrefetchScalarGridSpec(
            num_scalar_prefetch=0,
            grid=grid,
            in_specs=[
                pl.BlockSpec((bn, kw), lambda i: (i, 0)),
                pl.BlockSpec((kw, w_out), lambda i: (0, 0)),       # resident weight
                pl.BlockSpec(memory_space=pltpu.MemorySpace.SMEM),  # bias scalar
            ],
            out_specs=pl.BlockSpec((bn, w_out), lambda i: (i, 0)),
        ),
        compiler_params=pltpu.CompilerParams(
            dimension_semantics=("parallel",)),
    )(x_flat, wmat, b_r)


def _forward_wide(x3, w_col, b_r, target_bytes):
    n, k, w = x3.shape
    itemsize = x3.dtype.itemsize
    tw = _pick_w_tile(w)
    bn = _pick_batch_block(n, k * tw * itemsize, target_bytes)
    grid = (pl.cdiv(n, bn), w // tw)

    return pl.pallas_call(
        _wide_kernel,
        out_shape=jax.ShapeDtypeStruct((n, w), x3.dtype),
        grid_spec=pltpu.PrefetchScalarGridSpec(
            num_scalar_prefetch=0,
            grid=grid,
            in_specs=[
                pl.BlockSpec((bn, k, tw), lambda i, j: (i, 0, j)),
                pl.BlockSpec((k, 1), lambda i, j: (0, 0)),          # resident weight
                pl.BlockSpec(memory_space=pltpu.MemorySpace.SMEM),  # bias scalar
            ],
            out_specs=pl.BlockSpec((bn, tw), lambda i, j: (i, j)),
        ),
        compiler_params=pltpu.CompilerParams(
            dimension_semantics=("parallel", "parallel")),
    )(x3, w_col, b_r)


def output_layer_forward(x, weight, bias, *, target_block_bytes=_TARGET_BLOCK_BYTES):
    """x: [N, C, H, W]; weight: [1, C, H, 1]; bias: [1] -> sigmoid(conv) [N, W]."""
    n, c, h, w = x.shape
    k = c * h
    w_vec = weight.reshape(k).astype(x.dtype)
    b_r = bias.reshape(1, 1).astype(x.dtype)

    if w % 128 == 0:
        return _forward_wide(x.reshape(n, k, w), w_vec.reshape(k, 1), b_r,
                             target_block_bytes)
    # Lane-sparse W: flatten (free, contiguous reshape) to (N, K*W) so the DMA tiles
    # are full-lane slabs; fold the strided k-reduction into the structured matmul.
    return _forward_flat(x.reshape(n, k * w), w_vec, b_r, w, target_block_bytes)


# ---------------------------------------------------------------------------
# Self-test
# ---------------------------------------------------------------------------

if __name__ == "__main__":
    # Shapes consistent with the module: x_shape = [N, C, H, W]
    N, C, H, W = 2, 4, 16, 16

    key = jax.random.PRNGKey(0)
    k_x, k_w, k_b = jax.random.split(key, 3)

    x = jax.random.normal(k_x, (N, C, H, W), dtype=jnp.float32)
    # Conv2d(C, 1, kernel_size=[H, 1]) parameters: weight (1, C, H, 1), bias (1,)
    weight = jax.random.normal(k_w, (1, C, H, 1), dtype=jnp.float32) * 0.1
    bias = jax.random.normal(k_b, (1,), dtype=jnp.float32) * 0.1

    out = jax.block_until_ready(output_layer_forward(x, weight, bias))
    ref = jax.nn.sigmoid(
        jnp.einsum("nchw,ch->nw", x, weight[0, :, :, 0], precision="highest")
        + bias[0])
    assert out.shape == (N, W)
    assert jnp.allclose(out, ref, atol=5e-3, rtol=0.0)

    # Also exercise the lane-dense (W % 128 == 0) path once.
    N2, C2, H2, W2 = 2, 4, 8, 128
    x2 = jax.random.normal(k_x, (N2, C2, H2, W2), dtype=jnp.float32)
    w2 = jax.random.normal(k_w, (1, C2, H2, 1), dtype=jnp.float32) * 0.1
    b2 = jax.random.normal(k_b, (1,), dtype=jnp.float32) * 0.1
    out2 = jax.block_until_ready(output_layer_forward(x2, w2, b2))
    ref2 = jax.nn.sigmoid(
        jnp.einsum("nchw,ch->nw", x2, w2[0, :, :, 0], precision="highest") + b2[0])
    assert out2.shape == (N2, W2)
    assert jnp.allclose(out2, ref2, atol=5e-3, rtol=0.0)

    print("KERNEL_OK")
</pallas_src>

<mosaic_0001>
module attributes {stable_mosaic.version = 11 : i64} {
  func.func @_flat_kernel(%arg0: i32, %arg1: memref<2x1024xf32, #tpu.memory_space<vmem>>, %arg2: memref<1024x16xf32, #tpu.memory_space<vmem>>, %arg3: memref<1x1xf32, #tpu.memory_space<smem>>, %arg4: memref<2x16xf32, #tpu.memory_space<vmem>>) attributes {dimension_semantics = [#tpu.dimension_semantics<parallel>], iteration_bounds = array<i64: 1>, scalar_prefetch = 0 : i64, scratch_operands = 0 : i64, tpu.core_type = #tpu.core_type<tc>, window_params = [{transform_indices = @transform_0, window_bounds = array<i64: 2, 1024>}, {pipeline_mode = #tpu.pipeline_mode<synchronous>, transform_indices = @transform_1, window_bounds = array<i64: 1024, 16>}, {transform_indices = @transform_2, window_bounds = array<i64: 1, 1>}, {transform_indices = @transform_3, window_bounds = array<i64: 2, 16>}]} {
    %c0 = arith.constant 0 : index
    %c0_0 = arith.constant 0 : index
    %0 = vector.load %arg1[%c0, %c0_0] : memref<2x1024xf32, #tpu.memory_space<vmem>>, vector<2x1024xf32>
    %c0_1 = arith.constant 0 : index
    %c0_2 = arith.constant 0 : index
    %1 = vector.load %arg2[%c0_1, %c0_2] : memref<1024x16xf32, #tpu.memory_space<vmem>>, vector<1024x16xf32>
    %cst = arith.constant dense<0.000000e+00> : vector<2x16xf32>
    %2 = tpu.matmul %0, %1, %cst {dimension_numbers = #tpu.dot_dimension_numbers<[1], [0], [0], [1], [0, 0, 1, 1], [], []>} : vector<2x1024xf32>, vector<1024x16xf32>, vector<2x16xf32> -> vector<2x16xf32>
    %c0_3 = arith.constant 0 : index
    %c0_4 = arith.constant 0 : index
    %3 = memref.load %arg3[%c0_3, %c0_4] : memref<1x1xf32, #tpu.memory_space<smem>>
    %4 = vector.broadcast %3 : f32 to vector<2x16xf32>
    %5 = arith.addf %2, %4 : vector<2x16xf32>
    %6 = arith.negf %5 : vector<2x16xf32>
    %7 = math.exp %6 : vector<2x16xf32>
    %cst_5 = arith.constant 1.000000e+00 : f32
    %8 = vector.broadcast %cst_5 : f32 to vector<2x16xf32>
    %9 = arith.addf %8, %7 : vector<2x16xf32>
    %10 = arith.divf %8, %9 : vector<2x16xf32>
    %c0_6 = arith.constant 0 : index
    %c0_7 = arith.constant 0 : index
    %11 = vector.load %arg4[%c0_6, %c0_7] : memref<2x16xf32, #tpu.memory_space<vmem>>, vector<2x16xf32>
    tpu.vector_store %arg4[%c0_6, %c0_7], %10 {strides = array<i32>} : memref<2x16xf32, #tpu.memory_space<vmem>>, vector<2x16xf32>,
    return
  }
  func.func @transform_0(%arg0: i32) -> (i32, i32) {
    %c0_i32 = arith.constant 0 : i32
    %c0_i32_0 = arith.constant 0 : i32
    return %arg0, %c0_i32 : i32, i32
  }
  func.func @transform_1(%arg0: i32) -> (i32, i32) {
    %c0_i32 = arith.constant 0 : i32
    %c0_i32_0 = arith.constant 0 : i32
    %c0_i32_1 = arith.constant 0 : i32
    return %c0_i32, %c0_i32_0 : i32, i32
  }
  func.func @transform_2(%arg0: i32) -> (i32, i32) {
    %c0_i32 = arith.constant 0 : i32
    %c0_i32_0 = arith.constant 0 : i32
    %c0_i32_1 = arith.constant 0 : i32
    return %c0_i32, %c0_i32_0 : i32, i32
  }
  func.func @transform_3(%arg0: i32) -> (i32, i32) {
    %c0_i32 = arith.constant 0 : i32
    %c0_i32_0 = arith.constant 0 : i32
    return %arg0, %c0_i32 : i32, i32
  }
}

</mosaic_0001>

<llo_original>
// kernel: tpu_custom_call.1
$region0: #{tpu_custom_call.1}
  #allocation0 [shape = 'u32[]', space=smem, size = 0x4, offset = 0x4, fixed_abs, tag = 'smem constant byte address 0x4 - core index']
  #allocation1 [shape = 'u32[72,128]{1,0:T(1,128)}', space=vmem, size = 0x9000, scoped, tag = 'internal scratch']
  #allocation2 [shape = 'f32[1,1]{1,0:T(1,128)S(6)}', space=smem, size = 0x200, scoped, tag = 'scoped memory for tpu_custom_call.1']
  %s0 = inlined_call_operand.vmem [shape: f32[2,1024], index: 0, kind: input, shape index: {}]
  %s1 = inlined_call_operand.vmem [shape: f32[1024,16], index: 1, kind: input, shape index: {}]
  %s2 = inlined_call_operand.<no memory space> [shape: f32[1,1], index: 2, kind: input, shape index: {}]
  %s3 = inlined_call_operand.hbm [shape: f32[2,16], index: 3, kind: output, shape index: {}]
  %s4 = sld [smem:[#allocation0]]
  $region22: #{tpu_custom_call.1} parent=0
    _
  %s6 = ssub.s32 1, %s4
  %s7 = scalar_select 0, %s6, %s4
  %8 = sst [smem:[#allocation2]] %s2
  $region1: #{tpu_custom_call.1} parent=0
    #allocation3 [shape = 'u8[1024]{0}', space=vmem, size = 0x400, scoped, tag = 'output window, operand 0, single buffered']
    #allocation4 [shape = 's32[1]{0}', space=sflag, size = 0x4, scoped, tag = 'scoped memory for tpu_custom_call.1']
    %9 = vsyncpa [#allocation4], 0
    // Predicated region
    $region2: #{tpu_custom_call.1} parent=1 // pred_check
      _
    $region3: #{tpu_custom_call.1} parent=1 // pred_check_branch
      %11 = sbr.rel (0) target = $region5
    $region4: #{tpu_custom_call.1} parent=1 // pred_region
      _
    $region5: #{tpu_custom_call.1} parent=1 // pred_fallthru
      _
    // Predicated region
    $region6: #{tpu_custom_call.1} parent=1 // pred_check
      _
    $region7: #{tpu_custom_call.1} parent=1 // pred_check_branch
      %13 = sbr.rel (0) target = $region9
    $region8: #{tpu_custom_call.1} parent=1 // pred_region
      _
    $region9: #{tpu_custom_call.1} parent=1 // pred_fallthru
      _
    // Predicated region
    $region10: #{tpu_custom_call.1} parent=1 // pred_check
      _
    $region11: #{tpu_custom_call.1} parent=1 // pred_check_branch
      %15 = sbr.rel (0) target = $region13
    $region12: #{tpu_custom_call.1} parent=1 // pred_region
      _
    $region13: #{tpu_custom_call.1} parent=1 // pred_fallthru
      _
    %v16 = vld [vmem:[%s0] sm:$0xff]
    %v17 = vld [vmem:[%s0 + $0x8] sm:$0xff]
    %v18 = vld [vmem:[%s1] sm:$0xff]
    %v19 = vld [vmem:[%s1 + $0x8] sm:$0xff]
    %v20 = vld [vmem:[%s1 + $0x10] sm:$0xff]
    %v21 = vld [vmem:[%s1 + $0x18] sm:$0xff]
    %v22 = vld [vmem:[%s1 + $0x20] sm:$0xff]
    %v23 = vld [vmem:[%s1 + $0x28] sm:$0xff]
    %v24 = vld [vmem:[%s1 + $0x30] sm:$0xff]
    %v25 = vld [vmem:[%s1 + $0x38] sm:$0xff]
    %v26 = vld [vmem:[%s1 + $0x40] sm:$0xff]
    %v27 = vld [vmem:[%s1 + $0x48] sm:$0xff]
    %v28 = vld [vmem:[%s1 + $0x50] sm:$0xff]
    %v29 = vld [vmem:[%s1 + $0x58] sm:$0xff]
    %v30 = vld [vmem:[%s1 + $0x60] sm:$0xff]
    %v31 = vld [vmem:[%s1 + $0x68] sm:$0xff]
    %v32 = vld [vmem:[%s1 + $0x70] sm:$0xff]
    %v33 = vld [vmem:[%s1 + $0x78] sm:$0xff]
    %v34 = vld [vmem:[%s1 + $0x80] sm:$0xff]
    %v35 = vld [vmem:[%s1 + $0x88] sm:$0xff]
    %v36 = vld [vmem:[%s1 + $0x90] sm:$0xff]
    %v37 = vld [vmem:[%s1 + $0x98] sm:$0xff]
    %v38 = vld [vmem:[%s1 + $0xa0] sm:$0xff]
    %v39 = vld [vmem:[%s1 + $0xa8] sm:$0xff]
    %v40 = vld [vmem:[%s1 + $0xb0] sm:$0xff]
    %v41 = vld [vmem:[%s1 + $0xb8] sm:$0xff]
    %v42 = vld [vmem:[%s1 + $0xc0] sm:$0xff]
    %v43 = vld [vmem:[%s1 + $0xc8] sm:$0xff]
    %v44 = vld [vmem:[%s1 + $0xd0] sm:$0xff]
    %v45 = vld [vmem:[%s1 + $0xd8] sm:$0xff]
    %v46 = vld [vmem:[%s1 + $0xe0] sm:$0xff]
    %v47 = vld [vmem:[%s1 + $0xe8] sm:$0xff]
    %v48 = vld [vmem:[%s1 + $0xf0] sm:$0xff]
    %v49 = vld [vmem:[%s1 + $0xf8] sm:$0xff]
    %v50 = vld [vmem:[%s1 + $0x100] sm:$0xff]
    %v51 = vld [vmem:[%s1 + $0x108] sm:$0xff]
    %v52 = vld [vmem:[%s1 + $0x110] sm:$0xff]
    %v53 = vld [vmem:[%s1 + $0x118] sm:$0xff]
    %v54 = vld [vmem:[%s1 + $0x120] sm:$0xff]
    %v55 = vld [vmem:[%s1 + $0x128] sm:$0xff]
    %v56 = vld [vmem:[%s1 + $0x130] sm:$0xff]
    %v57 = vld [vmem:[%s1 + $0x138] sm:$0xff]
    %v58 = vld [vmem:[%s1 + $0x140] sm:$0xff]
    %v59 = vld [vmem:[%s1 + $0x148] sm:$0xff]
    %v60 = vld [vmem:[%s1 + $0x150] sm:$0xff]
    %v61 = vld [vmem:[%s1 + $0x158] sm:$0xff]
    %v62 = vld [vmem:[%s1 + $0x160] sm:$0xff]
    %v63 = vld [vmem:[%s1 + $0x168] sm:$0xff]
    %v64 = vld [vmem:[%s1 + $0x170] sm:$0xff]
    %v65 = vld [vmem:[%s1 + $0x178] sm:$0xff]
    %v66 = vld [vmem:[%s1 + $0x180] sm:$0xff]
    %v67 = vld [vmem:[%s1 + $0x188] sm:$0xff]
    %v68 = vld [vmem:[%s1 + $0x190] sm:$0xff]
    %v69 = vld [vmem:[%s1 + $0x198] sm:$0xff]
    %v70 = vld [vmem:[%s1 + $0x1a0] sm:$0xff]
    %v71 = vld [vmem:[%s1 + $0x1a8] sm:$0xff]
    %v72 = vld [vmem:[%s1 + $0x1b0] sm:$0xff]
    %v73 = vld [vmem:[%s1 + $0x1b8] sm:$0xff]
    %v74 = vld [vmem:[%s1 + $0x1c0] sm:$0xff]
    %v75 = vld [vmem:[%s1 + $0x1c8] sm:$0xff]
    %v76 = vld [vmem:[%s1 + $0x1d0] sm:$0xff]
    %v77 = vld [vmem:[%s1 + $0x1d8] sm:$0xff]
    %v78 = vld [vmem:[%s1 + $0x1e0] sm:$0xff]
    %v79 = vld [vmem:[%s1 + $0x1e8] sm:$0xff]
    %v80 = vld [vmem:[%s1 + $0x1f0] sm:$0xff]
    %v81 = vld [vmem:[%s1 + $0x1f8] sm:$0xff]
    %v82 = vld [vmem:[%s1 + $0x200] sm:$0xff]
    %v83 = vld [vmem:[%s1 + $0x208] sm:$0xff]
    %v84 = vld [vmem:[%s1 + $0x210] sm:$0xff]
    %v85 = vld [vmem:[%s1 + $0x218] sm:$0xff]
    %v86 = vld [vmem:[%s1 + $0x220] sm:$0xff]
    %v87 = vld [vmem:[%s1 + $0x228] sm:$0xff]
    %v88 = vld [vmem:[%s1 + $0x230] sm:$0xff]
    %v89 = vld [vmem:[%s1 + $0x238] sm:$0xff]
    %v90 = vld [vmem:[%s1 + $0x240] sm:$0xff]
    %v91 = vld [vmem:[%s1 + $0x248] sm:$0xff]
    %v92 = vld [vmem:[%s1 + $0x250] sm:$0xff]
    %v93 = vld [vmem:[%s1 + $0x258] sm:$0xff]
    %v94 = vld [vmem:[%s1 + $0x260] sm:$0xff]
    %v95 = vld [vmem:[%s1 + $0x268] sm:$0xff]
    %v96 = vld [vmem:[%s1 + $0x270] sm:$0xff]
    %v97 = vld [vmem:[%s1 + $0x278] sm:$0xff]
    %v98 = vld [vmem:[%s1 + $0x280] sm:$0xff]
    %v99 = vld [vmem:[%s1 + $0x288] sm:$0xff]
    %v100 = vld [vmem:[%s1 + $0x290] sm:$0xff]
    %v101 = vld [vmem:[%s1 + $0x298] sm:$0xff]
    %v102 = vld [vmem:[%s1 + $0x2a0] sm:$0xff]
    %v103 = vld [vmem:[%s1 + $0x2a8] sm:$0xff]
    %v104 = vld [vmem:[%s1 + $0x2b0] sm:$0xff]
    %v105 = vld [vmem:[%s1 + $0x2b8] sm:$0xff]
    %v106 = vld [vmem:[%s1 + $0x2c0] sm:$0xff]
    %v107 = vld [vmem:[%s1 + $0x2c8] sm:$0xff]
    %v108 = vld [vmem:[%s1 + $0x2d0] sm:$0xff]
    %v109 = vld [vmem:[%s1 + $0x2d8] sm:$0xff]
    %v110 = vld [vmem:[%s1 + $0x2e0] sm:$0xff]
    %v111 = vld [vmem:[%s1 + $0x2e8] sm:$0xff]
    %v112 = vld [vmem:[%s1 + $0x2f0] sm:$0xff]
    %v113 = vld [vmem:[%s1 + $0x2f8] sm:$0xff]
    %v114 = vld [vmem:[%s1 + $0x300] sm:$0xff]
    %v115 = vld [vmem:[%s1 + $0x308] sm:$0xff]
    %v116 = vld [vmem:[%s1 + $0x310] sm:$0xff]
    %v117 = vld [vmem:[%s1 + $0x318] sm:$0xff]
    %v118 = vld [vmem:[%s1 + $0x320] sm:$0xff]
    %v119 = vld [vmem:[%s1 + $0x328] sm:$0xff]
    %v120 = vld [vmem:[%s1 + $0x330] sm:$0xff]
    %v121 = vld [vmem:[%s1 + $0x338] sm:$0xff]
    %v122 = vld [vmem:[%s1 + $0x340] sm:$0xff]
    %v123 = vld [vmem:[%s1 + $0x348] sm:$0xff]
    %v124 = vld [vmem:[%s1 + $0x350] sm:$0xff]
    %v125 = vld [vmem:[%s1 + $0x358] sm:$0xff]
    %v126 = vld [vmem:[%s1 + $0x360] sm:$0xff]
    %v127 = vld [vmem:[%s1 + $0x368] sm:$0xff]
    %v128 = vld [vmem:[%s1 + $0x370] sm:$0xff]
    %v129 = vld [vmem:[%s1 + $0x378] sm:$0xff]
    %v130 = vld [vmem:[%s1 + $0x380] sm:$0xff]
    %v131 = vld [vmem:[%s1 + $0x388] sm:$0xff]
    %v132 = vld [vmem:[%s1 + $0x390] sm:$0xff]
    %v133 = vld [vmem:[%s1 + $0x398] sm:$0xff]
    %v134 = vld [vmem:[%s1 + $0x3a0] sm:$0xff]
    %v135 = vld [vmem:[%s1 + $0x3a8] sm:$0xff]
    %v136 = vld [vmem:[%s1 + $0x3b0] sm:$0xff]
    %v137 = vld [vmem:[%s1 + $0x3b8] sm:$0xff]
    %v138 = vld [vmem:[%s1 + $0x3c0] sm:$0xff]
    %v139 = vld [vmem:[%s1 + $0x3c8] sm:$0xff]
    %v140 = vld [vmem:[%s1 + $0x3d0] sm:$0xff]
    %v141 = vld [vmem:[%s1 + $0x3d8] sm:$0xff]
    %v142 = vld [vmem:[%s1 + $0x3e0] sm:$0xff]
    %v143 = vld [vmem:[%s1 + $0x3e8] sm:$0xff]
    %v144 = vld [vmem:[%s1 + $0x3f0] sm:$0xff]
    %v145 = vld [vmem:[%s1 + $0x3f8] sm:$0xff]
    %s146 = sld [smem:[#allocation2]]
    %v147 = vstv %s146
    %150 = vst [vmem:[#allocation1] ss:$4 sm:$0xff] %v16
    %s151 = scalar_lea.vmem [#allocation1], 32
    %152 = vst [vmem:[%s151] ss:$4 sm:$0xff] %v17
    %v153 = vld.sshfl [vmem:[#allocation1] sm:$0xff pattern:$0x73625140]
    %v154 = vld.sshfl [vmem:[#allocation1 + $0x8] sm:$0xff pattern:$0x73625140]
    %v155 = vld.sshfl [vmem:[#allocation1 + $0x10] sm:$0xff pattern:$0x73625140]
    %v156 = vld.sshfl [vmem:[#allocation1 + $0x18] sm:$0xff pattern:$0x73625140]
    %v157 = vld.sshfl [vmem:[#allocation1 + $0x20] sm:$0xff pattern:$0x73625140]
    %v158 = vld.sshfl [vmem:[#allocation1 + $0x28] sm:$0xff pattern:$0x73625140]
    %v159 = vld.sshfl [vmem:[#allocation1 + $0x30] sm:$0xff pattern:$0x73625140]
    %v160 = vld.sshfl [vmem:[#allocation1 + $0x38] sm:$0xff pattern:$0x73625140]
    %169 = vmatpush.msra.mxu0 %v33
    %170 = vmatpush.msra.mxu0 %v32
    %171 = vmatpush.msra.mxu0 %v31
    %172 = vmatpush.msra.mxu0 %v30
    %173 = vmatpush.msra.mxu0 %v29
    %174 = vmatpush.msra.mxu0 %v28
    %175 = vmatpush.msra.mxu0 %v27
    %176 = vmatpush.msra.mxu0 %v26
    %177 = vmatpush.msra.mxu0 %v25
    %178 = vmatpush.msra.mxu0 %v24
    %179 = vmatpush.msra.mxu0 %v23
    %180 = vmatpush.msra.mxu0 %v22
    %181 = vmatpush.msra.mxu0 %v21
    %182 = vmatpush.msra.mxu0 %v20
    %183 = vmatpush.msra.mxu0 %v19
    %184 = vmatpush.msra.mxu0 %v18
    %185 = vmatmul.f32.gmra.mxu0 %v153
    %v186 = vpop.f32.mrf.mxu0
    %v187 = vadd.f32 %v147, %v186
    %188 = vdwg.mxu0
    %189 = vmatpush.msra.mxu0 %v49
    %190 = vmatpush.msra.mxu0 %v48
    %191 = vmatpush.msra.mxu0 %v47
    %192 = vmatpush.msra.mxu0 %v46
    %193 = vmatpush.msra.mxu0 %v45
    %194 = vmatpush.msra.mxu0 %v44
    %195 = vmatpush.msra.mxu0 %v43
    %196 = vmatpush.msra.mxu0 %v42
    %197 = vmatpush.msra.mxu0 %v41
    %198 = vmatpush.msra.mxu0 %v40
    %199 = vmatpush.msra.mxu0 %v39
    %200 = vmatpush.msra.mxu0 %v38
    %201 = vmatpush.msra.mxu0 %v37
    %202 = vmatpush.msra.mxu0 %v36
    %203 = vmatpush.msra.mxu0 %v35
    %204 = vmatpush.msra.mxu0 %v34
    %205 = vmatmul.f32.gmra.mxu0 %v154
    %v206 = vpop.f32.mrf.mxu0
    %v207 = vadd.f32 %v187, %v206
    %208 = vdwg.mxu0
    %209 = vmatpush.msra.mxu0 %v65
    %210 = vmatpush.msra.mxu0 %v64
    %211 = vmatpush.msra.mxu0 %v63
    %212 = vmatpush.msra.mxu0 %v62
    %213 = vmatpush.msra.mxu0 %v61
    %214 = vmatpush.msra.mxu0 %v60
    %215 = vmatpush.msra.mxu0 %v59
    %216 = vmatpush.msra.mxu0 %v58
    %217 = vmatpush.msra.mxu0 %v57
    %218 = vmatpush.msra.mxu0 %v56
    %219 = vmatpush.msra.mxu0 %v55
    %220 = vmatpush.msra.mxu0 %v54
    %221 = vmatpush.msra.mxu0 %v53
    %222 = vmatpush.msra.mxu0 %v52
    %223 = vmatpush.msra.mxu0 %v51
    %224 = vmatpush.msra.mxu0 %v50
    %225 = vmatmul.f32.gmra.mxu0 %v155
    %v226 = vpop.f32.mrf.mxu0
    %v227 = vadd.f32 %v207, %v226
    %228 = vdwg.mxu0
    %229 = vmatpush.msra.mxu0 %v81
    %230 = vmatpush.msra.mxu0 %v80
    %231 = vmatpush.msra.mxu0 %v79
    %232 = vmatpush.msra.mxu0 %v78
    %233 = vmatpush.msra.mxu0 %v77
    %234 = vmatpush.msra.mxu0 %v76
    %235 = vmatpush.msra.mxu0 %v75
    %236 = vmatpush.msra.mxu0 %v74
    %237 = vmatpush.msra.mxu0 %v73
    %238 = vmatpush.msra.mxu0 %v72
    %239 = vmatpush.msra.mxu0 %v71
    %240 = vmatpush.msra.mxu0 %v70
    %241 = vmatpush.msra.mxu0 %v69
    %242 = vmatpush.msra.mxu0 %v68
    %243 = vmatpush.msra.mxu0 %v67
    %244 = vmatpush.msra.mxu0 %v66
    %245 = vmatmul.f32.gmra.mxu0 %v156
    %v246 = vpop.f32.mrf.mxu0
    %v247 = vadd.f32 %v227, %v246
    %248 = vdwg.mxu0
    %249 = vmatpush.msra.mxu0 %v97
    %250 = vmatpush.msra.mxu0 %v96
    %251 = vmatpush.msra.mxu0 %v95
    %252 = vmatpush.msra.mxu0 %v94
    %253 = vmatpush.msra.mxu0 %v93
    %254 = vmatpush.msra.mxu0 %v92
    %255 = vmatpush.msra.mxu0 %v91
    %256 = vmatpush.msra.mxu0 %v90
    %257 = vmatpush.msra.mxu0 %v89
    %258 = vmatpush.msra.mxu0 %v88
    %259 = vmatpush.msra.mxu0 %v87
    %260 = vmatpush.msra.mxu0 %v86
    %261 = vmatpush.msra.mxu0 %v85
    %262 = vmatpush.msra.mxu0 %v84
    %263 = vmatpush.msra.mxu0 %v83
    %264 = vmatpush.msra.mxu0 %v82
    %265 = vmatmul.f32.gmra.mxu0 %v157
    %v266 = vpop.f32.mrf.mxu0
    %v267 = vadd.f32 %v247, %v266
    %268 = vdwg.mxu0
    %269 = vmatpush.msra.mxu0 %v113
    %270 = vmatpush.msra.mxu0 %v112
    %271 = vmatpush.msra.mxu0 %v111
    %272 = vmatpush.msra.mxu0 %v110
    %273 = vmatpush.msra.mxu0 %v109
    %274 = vmatpush.msra.mxu0 %v108
    %275 = vmatpush.msra.mxu0 %v107
    %276 = vmatpush.msra.mxu0 %v106
    %277 = vmatpush.msra.mxu0 %v105
    %278 = vmatpush.msra.mxu0 %v104
    %279 = vmatpush.msra.mxu0 %v103
    %280 = vmatpush.msra.mxu0 %v102
    %281 = vmatpush.msra.mxu0 %v101
    %282 = vmatpush.msra.mxu0 %v100
    %283 = vmatpush.msra.mxu0 %v99
    %284 = vmatpush.msra.mxu0 %v98
    %285 = vmatmul.f32.gmra.mxu0 %v158
    %v286 = vpop.f32.mrf.mxu0
    %v287 = vadd.f32 %v267, %v286
    %288 = vdwg.mxu0
    %289 = vmatpush.msra.mxu0 %v129
    %290 = vmatpush.msra.mxu0 %v128
    %291 = vmatpush.msra.mxu0 %v127
    %292 = vmatpush.msra.mxu0 %v126
    %293 = vmatpush.msra.mxu0 %v125
    %294 = vmatpush.msra.mxu0 %v124
    %295 = vmatpush.msra.mxu0 %v123
    %296 = vmatpush.msra.mxu0 %v122
    %297 = vmatpush.msra.mxu0 %v121
    %298 = vmatpush.msra.mxu0 %v120
    %299 = vmatpush.msra.mxu0 %v119
    %300 = vmatpush.msra.mxu0 %v118
    %301 = vmatpush.msra.mxu0 %v117
    %302 = vmatpush.msra.mxu0 %v116
    %303 = vmatpush.msra.mxu0 %v115
    %304 = vmatpush.msra.mxu0 %v114
    %305 = vmatmul.f32.gmra.mxu0 %v159
    %v306 = vpop.f32.mrf.mxu0
    %v307 = vadd.f32 %v287, %v306
    %308 = vdwg.mxu0
    %309 = vmatpush.msra.mxu0 %v145
    %310 = vmatpush.msra.mxu0 %v144
    %311 = vmatpush.msra.mxu0 %v143
    %312 = vmatpush.msra.mxu0 %v142
    %313 = vmatpush.msra.mxu0 %v141
    %314 = vmatpush.msra.mxu0 %v140
    %315 = vmatpush.msra.mxu0 %v139
    %316 = vmatpush.msra.mxu0 %v138
    %317 = vmatpush.msra.mxu0 %v137
    %318 = vmatpush.msra.mxu0 %v136
    %319 = vmatpush.msra.mxu0 %v135
    %320 = vmatpush.msra.mxu0 %v134
    %321 = vmatpush.msra.mxu0 %v133
    %322 = vmatpush.msra.mxu0 %v132
    %323 = vmatpush.msra.mxu0 %v131
    %324 = vmatpush.msra.mxu0 %v130
    %325 = vmatmul.f32.gmra.mxu0 %v160
    %v326 = vpop.f32.mrf.mxu0
    %v327 = vadd.f32 %v307, %v326
    %328 = vdwg.mxu0
    %v329 = vxor.u32 %v327, 2147483648
    %v330 = vmul.f32 %v329, 1.442695
    %v331 = vpow.pop %v330
    %v332 = vadd.f32 %v331, 1.0
    %v333 = vrcp.pop %v332
    %v334 = vmul.f32 %v332, %v333
    %v335 = vsub.f32 1.0, %v334
    %v336 = vmul.f32 %v333, %v335
    %v337 = vadd.f32 %v333, %v336
    %vm338 = vweird.f32 %v332
    %vm339 = vweird.f32 %v333
    %vm340 = vmor %vm338, %vm339
    %v341 = vsel %vm340, %v333, %v337
    %v342 = vand.u32 2147483647, %v332
    %vm343 = vcmp.eq.f32.partialorder %v342, 8.507059e+37
    %v344 = vand.u32 %v332, 2147483648
    %v345 = vor.u32 1.1754944e-38, %v344
    %v346 = vsel %vm343, %v345, %v341
    %v347 = vmul.f32 1.0, %v346
    %vm348 = vcmask 123904
    %349 = vst.msk [vmem:[#allocation3] sm:$0x3] %vm348, %v347
    // Predicated region
    $region14: #{tpu_custom_call.1} parent=1 // pred_check
      _
    $region15: #{tpu_custom_call.1} parent=1 // pred_check_branch
      %351 = sbr.rel (0) target = $region17
    $region16: #{tpu_custom_call.1} parent=1 // pred_region
      %353 = vsyncadd [#allocation4], 0
      %s355 = sshll.u32 [#allocation3], 4
      %s356 = int_to_ptr.vmem [resolvable:$true] %s355
      %s357 = sshll.u32 %s3, 4
      %s358 = int_to_ptr.hbm [resolvable:$true] %s357
      %360 = dma.vmem_to_hbm [thread:$0]  %s356, 32, %s358, [#allocation4]
    $region17: #{tpu_custom_call.1} parent=1 // pred_fallthru
      _
    // Predicated region
    $region18: #{tpu_custom_call.1} parent=1 // pred_check
      _
    $region19: #{tpu_custom_call.1} parent=1 // pred_check_branch
      %362 = sbr.rel (0) target = $region21
    $region20: #{tpu_custom_call.1} parent=1 // pred_region
      %364 = dma.done [#allocation4], 32
    $region21: #{tpu_custom_call.1} parent=1 // pred_fallthru
      _
    %365 = vsyncpa [#allocation4], 1

</llo_original>
